<compile_context>
chip_gen: v6e
topology: v6e:2x2x1
jax: 0.10.0
libtpu: 0.0.40
codegen_flags: <defaults>
</compile_context>

<pallas_src>
import functools

import jax
import jax.numpy as jnp
from jax.experimental import pallas as pl
from jax.experimental.pallas import tpu as pltpu


def _round_up(x: int, m: int) -> int:
    return (x + m - 1) // m * m


def _vmem_capacity_bytes() -> int:
    try:
        return int(pltpu.get_tpu_info().vmem_capacity_bytes)
    except Exception:
        return 64 << 20  # conservative (v7x per-TC VMEM)


def _choose_batch_tile(batch: int, batch_tile: int) -> int:
    """Sublane-packed tile with >=2 grid steps when batch is big enough."""
    if batch <= 32:
        return batch  # full-array block is always a legal BlockSpec dim
    return min(batch_tile, _round_up(pl.cdiv(batch, 2), 16))


def _make_mlp_kernel(n_layers: int):
    """Ref order: obs, W_0 .. W_{n_layers}, packed_bias, out."""

    def kernel(obs_ref, *refs):
        w_refs = refs[:n_layers + 1]
        bias_ref = refs[n_layers + 1]
        out_ref = refs[n_layers + 2]

        bias_all = bias_ref[...]                 # (n_layers+1, max_w) f32
        h = obs_ref[...].astype(jnp.bfloat16)    # f32 -> bf16 cast in-kernel

        # hidden layers: tanh(h @ W + b); bf16 matmul, f32 accumulate/activate
        for i in range(n_layers):
            w = w_refs[i][...]                   # (d_in, d_out) bf16
            d_out = w.shape[-1]
            b = bias_all[i:i + 1, :d_out]        # (1, d_out) f32
            acc = jnp.dot(h, w, preferred_element_type=jnp.float32) + b
            h = jnp.tanh(acc).astype(jnp.bfloat16)

        # output head: identity activation
        w = w_refs[n_layers][...]
        d_out = w.shape[-1]
        b = bias_all[n_layers:n_layers + 1, :d_out]
        out = jnp.dot(h, w, preferred_element_type=jnp.float32) + b
        out_ref[...] = out.astype(out_ref.dtype)

    return kernel


def init_mlp_params(key, ob_dim, ac_dim, n_layers, size):
    """Deterministic init mimicking torch.nn.Linear default U(-1/sqrt(fan_in), .)."""
    dims = [ob_dim] + [size] * n_layers + [ac_dim]
    params = []
    for i in range(len(dims) - 1):
        fan_in, fan_out = dims[i], dims[i + 1]
        key, kw, kb = jax.random.split(key, 3)
        bound = 1.0 / jnp.sqrt(jnp.float32(fan_in))
        w = jax.random.uniform(kw, (fan_in, fan_out), jnp.float32, -bound, bound)
        b = jax.random.uniform(kb, (1, fan_out), jnp.float32, -bound, bound)
        params.extend([w, b])
    return params


def pack_mlp_params(params, n_layers):
    """One-time packing: bf16 weights + one stacked f32 bias buffer."""
    ws = tuple(params[2 * i].astype(jnp.bfloat16) for i in range(n_layers + 1))
    widths = [int(params[2 * i + 1].size) for i in range(n_layers + 1)]
    max_w = max(widths)
    rows = [jnp.pad(params[2 * i + 1].reshape(-1).astype(jnp.float32),
                    (0, max_w - widths[i]))
            for i in range(n_layers + 1)]
    bias = jnp.stack(rows)                       # (n_layers+1, max_w)
    return ws, bias


@functools.partial(jax.jit, static_argnames=("n_layers", "discrete", "batch_tile"))
def mlp_policy_forward(obs, ws, bias, logstd, *, n_layers, discrete=False,
                       batch_tile=1024):
    """Pallas forward pass of MLPPolicy.

    Continuous: returns (batch_mean, scale_tril) where scale_tril is the
                batch-invariant (ac_dim, ac_dim) diag(exp(logstd)) — the
                MultivariateNormal consumer broadcasts it over batch.
    Discrete:   returns logits (Categorical params).
    """
    batch, ob_dim = obs.shape
    ac_dim = ws[-1].shape[-1]

    tb = _choose_batch_tile(batch, batch_tile)
    grid = (pl.cdiv(batch, tb),)                 # ragged last block is masked

    in_specs = [pl.BlockSpec((tb, ob_dim), lambda i: (i, 0))]
    for w in ws:                                  # constant index_map -> resident
        in_specs.append(pl.BlockSpec(w.shape, lambda i: (0, 0)))
    in_specs.append(pl.BlockSpec(bias.shape, lambda i: (0, 0)))
    out_specs = pl.BlockSpec((tb, ac_dim), lambda i: (i, 0))
    out_shape = jax.ShapeDtypeStruct((batch, ac_dim), jnp.float32)

    # VMEM budget: 2x params (default input double-buffering) + io tiles + headroom,
    # capped well under physical capacity (v7x = 64 MiB per TensorCore).
    param_bytes = sum(int(w.size) * w.dtype.itemsize for w in ws) + int(bias.size) * 4
    io_bytes = 2 * (tb * ob_dim * 4 + tb * ac_dim * 4)
    need = 2 * param_bytes + io_bytes + (4 << 20)
    cap = int(0.7 * _vmem_capacity_bytes())
    vmem_limit = int(min(max(need, 32 << 20), cap))

    out = pl.pallas_call(
        _make_mlp_kernel(n_layers),
        out_shape=out_shape,
        grid=grid,
        in_specs=in_specs,
        out_specs=out_specs,
        compiler_params=pltpu.CompilerParams(
            dimension_semantics=("parallel",),
            vmem_limit_bytes=vmem_limit),
    )(obs, *ws, bias)

    if discrete:
        return out

    # Batch-invariant Cholesky factor of the diagonal Gaussian (not broadcast).
    scale_tril = jnp.diag(jnp.exp(logstd.reshape(-1).astype(jnp.float32)))
    return out, scale_tril


if __name__ == "__main__":
    # Small shapes consistent with the module's forward():
    #   obs: [batch, ob_dim], MLP: n_layers hidden layers of width `size`,
    #   output head of width ac_dim, logstd: [ac_dim].
    batch, ob_dim, ac_dim, n_layers, size = 8, 16, 4, 2, 32

    key = jax.random.PRNGKey(0)
    key, k_obs, k_params = jax.random.split(key, 3)

    obs = jax.random.normal(k_obs, (batch, ob_dim), jnp.float32)
    params = init_mlp_params(k_params, ob_dim, ac_dim, n_layers, size)
    logstd = jnp.zeros((ac_dim,), jnp.float32)   # nn.Parameter(torch.zeros(ac_dim))

    # One-time packing (hoisted out of the per-call path).
    ws, bias = pack_mlp_params(params, n_layers)

    # Continuous policy (default discrete=False in the module).
    mean, scale_tril = mlp_policy_forward(
        obs, ws, bias, logstd, n_layers=n_layers, discrete=False)
    jax.block_until_ready((mean, scale_tril))

    # Discrete policy branch (Categorical logits) reuses the same MLP kernel.
    logits = mlp_policy_forward(
        obs, ws, bias, logstd, n_layers=n_layers, discrete=True)
    jax.block_until_ready(logits)

    # Reference mirroring the kernel's numerics (bf16 matmuls, f32 accum).
    def ref_fwd(o):
        h = o.astype(jnp.bfloat16)
        for i in range(n_layers):
            h = jnp.tanh(
                jnp.dot(h, params[2 * i].astype(jnp.bfloat16),
                        preferred_element_type=jnp.float32) + params[2 * i + 1]
            ).astype(jnp.bfloat16)
        return (jnp.dot(h, params[2 * n_layers].astype(jnp.bfloat16),
                        preferred_element_type=jnp.float32)
                + params[2 * n_layers + 1])

    ref_mean = ref_fwd(obs)
    ref_scale = jnp.diag(jnp.exp(logstd))

    assert mean.shape == (batch, ac_dim)
    assert scale_tril.shape == (ac_dim, ac_dim)
    assert logits.shape == (batch, ac_dim)
    assert jnp.allclose(mean, ref_mean, atol=1e-4, rtol=1e-4)
    assert jnp.allclose(scale_tril, ref_scale, atol=1e-6)
    assert jnp.allclose(logits, ref_mean, atol=1e-4, rtol=1e-4)

    # Sanity vs full-f32 reference (bf16 weights -> loose tolerance).
    h32 = obs
    for i in range(n_layers):
        h32 = jnp.tanh(h32 @ params[2 * i] + params[2 * i + 1])
    ref32 = h32 @ params[2 * n_layers] + params[2 * n_layers + 1]
    assert jnp.allclose(mean, ref32, atol=3e-2, rtol=3e-2)

    # Multi-tile + ragged-boundary path (grid of 2 -> both v7x TensorCores).
    batch2 = 40
    obs2 = jax.random.normal(key, (batch2, ob_dim), jnp.float32)
    mean2, _ = mlp_policy_forward(
        obs2, ws, bias, logstd, n_layers=n_layers, discrete=False)
    jax.block_until_ready(mean2)
    assert mean2.shape == (batch2, ac_dim)
    assert jnp.allclose(mean2, ref_fwd(obs2), atol=1e-4, rtol=1e-4)

    print("KERNEL_OK")
</pallas_src>

<mosaic_0001>
module attributes {stable_mosaic.version = 11 : i64} {
  func.func @kernel(%arg0: i32, %arg1: memref<8x16xf32, #tpu.memory_space<vmem>>, %arg2: memref<16x32xbf16, #tpu.memory_space<vmem>>, %arg3: memref<32x32xbf16, #tpu.memory_space<vmem>>, %arg4: memref<32x4xbf16, #tpu.memory_space<vmem>>, %arg5: memref<3x32xf32, #tpu.memory_space<vmem>>, %arg6: memref<8x4xf32, #tpu.memory_space<vmem>>) attributes {dimension_semantics = [#tpu.dimension_semantics<parallel>], iteration_bounds = array<i64: 1>, scalar_prefetch = 0 : i64, scratch_operands = 0 : i64, tpu.core_type = #tpu.core_type<tc>, window_params = [{transform_indices = @transform_0, window_bounds = array<i64: 8, 16>}, {pipeline_mode = #tpu.pipeline_mode<synchronous>, transform_indices = @transform_1, window_bounds = array<i64: 16, 32>}, {pipeline_mode = #tpu.pipeline_mode<synchronous>, transform_indices = @transform_2, window_bounds = array<i64: 32, 32>}, {pipeline_mode = #tpu.pipeline_mode<synchronous>, transform_indices = @transform_3, window_bounds = array<i64: 32, 4>}, {pipeline_mode = #tpu.pipeline_mode<synchronous>, transform_indices = @transform_4, window_bounds = array<i64: 3, 32>}, {transform_indices = @transform_5, window_bounds = array<i64: 8, 4>}]} {
    %c0 = arith.constant 0 : index
    %c0_0 = arith.constant 0 : index
    %0 = vector.load %arg5[%c0, %c0_0] : memref<3x32xf32, #tpu.memory_space<vmem>>, vector<3x32xf32>
    %c0_1 = arith.constant 0 : index
    %c0_2 = arith.constant 0 : index
    %1 = vector.load %arg1[%c0_1, %c0_2] : memref<8x16xf32, #tpu.memory_space<vmem>>, vector<8x16xf32>
    %2 = arith.truncf %1 : vector<8x16xf32> to vector<8x16xbf16>
    %c0_3 = arith.constant 0 : index
    %c0_4 = arith.constant 0 : index
    %3 = vector.load %arg2[%c0_3, %c0_4] : memref<16x32xbf16, #tpu.memory_space<vmem>>, vector<16x32xbf16>
    %4 = vector.extract_strided_slice %0 {offsets = [0, 0], sizes = [1, 32], strides = [1, 1]} : vector<3x32xf32> to vector<1x32xf32>
    %cst = arith.constant dense<0.000000e+00> : vector<8x32xf32>
    %5 = tpu.matmul %2, %3, %cst {dimension_numbers = #tpu.dot_dimension_numbers<[1], [0], [0], [1], [0, 0, 1, 1], [], []>} : vector<8x16xbf16>, vector<16x32xbf16>, vector<8x32xf32> -> vector<8x32xf32>
    %6 = vector.broadcast %4 : vector<1x32xf32> to vector<8x32xf32>
    %7 = arith.addf %5, %6 : vector<8x32xf32>
    %8 = math.tanh %7 : vector<8x32xf32>
    %9 = arith.truncf %8 : vector<8x32xf32> to vector<8x32xbf16>
    %c0_5 = arith.constant 0 : index
    %c0_6 = arith.constant 0 : index
    %10 = vector.load %arg3[%c0_5, %c0_6] : memref<32x32xbf16, #tpu.memory_space<vmem>>, vector<32x32xbf16>
    %11 = vector.extract_strided_slice %0 {offsets = [1, 0], sizes = [1, 32], strides = [1, 1]} : vector<3x32xf32> to vector<1x32xf32>
    %cst_7 = arith.constant dense<0.000000e+00> : vector<8x32xf32>
    %12 = tpu.matmul %9, %10, %cst_7 {dimension_numbers = #tpu.dot_dimension_numbers<[1], [0], [0], [1], [0, 0, 1, 1], [], []>} : vector<8x32xbf16>, vector<32x32xbf16>, vector<8x32xf32> -> vector<8x32xf32>
    %13 = vector.broadcast %11 : vector<1x32xf32> to vector<8x32xf32>
    %14 = arith.addf %12, %13 : vector<8x32xf32>
    %15 = math.tanh %14 : vector<8x32xf32>
    %16 = arith.truncf %15 : vector<8x32xf32> to vector<8x32xbf16>
    %c0_8 = arith.constant 0 : index
    %c0_9 = arith.constant 0 : index
    %17 = vector.load %arg4[%c0_8, %c0_9] : memref<32x4xbf16, #tpu.memory_space<vmem>>, vector<32x4xbf16>
    %18 = vector.extract_strided_slice %0 {offsets = [2, 0], sizes = [1, 4], strides = [1, 1]} : vector<3x32xf32> to vector<1x4xf32>
    %cst_10 = arith.constant dense<0.000000e+00> : vector<8x4xf32>
    %19 = tpu.matmul %16, %17, %cst_10 {dimension_numbers = #tpu.dot_dimension_numbers<[1], [0], [0], [1], [0, 0, 1, 1], [], []>} : vector<8x32xbf16>, vector<32x4xbf16>, vector<8x4xf32> -> vector<8x4xf32>
    %20 = vector.broadcast %18 : vector<1x4xf32> to vector<8x4xf32>
    %21 = arith.addf %19, %20 : vector<8x4xf32>
    %c0_11 = arith.constant 0 : index
    %c0_12 = arith.constant 0 : index
    %22 = vector.load %arg6[%c0_11, %c0_12] : memref<8x4xf32, #tpu.memory_space<vmem>>, vector<8x4xf32>
    tpu.vector_store %arg6[%c0_11, %c0_12], %21 {strides = array<i32>} : memref<8x4xf32, #tpu.memory_space<vmem>>, vector<8x4xf32>,
    return
  }
  func.func @transform_0(%arg0: i32) -> (i32, i32) {
    %c0_i32 = arith.constant 0 : i32
    %c0_i32_0 = arith.constant 0 : i32
    return %arg0, %c0_i32 : i32, i32
  }
  func.func @transform_1(%arg0: i32) -> (i32, i32) {
    %c0_i32 = arith.constant 0 : i32
    %c0_i32_0 = arith.constant 0 : i32
    %c0_i32_1 = arith.constant 0 : i32
    return %c0_i32, %c0_i32_0 : i32, i32
  }
  func.func @transform_2(%arg0: i32) -> (i32, i32) {
    %c0_i32 = arith.constant 0 : i32
    %c0_i32_0 = arith.constant 0 : i32
    %c0_i32_1 = arith.constant 0 : i32
    return %c0_i32, %c0_i32_0 : i32, i32
  }
  func.func @transform_3(%arg0: i32) -> (i32, i32) {
    %c0_i32 = arith.constant 0 : i32
    %c0_i32_0 = arith.constant 0 : i32
    %c0_i32_1 = arith.constant 0 : i32
    return %c0_i32, %c0_i32_0 : i32, i32
  }
  func.func @transform_4(%arg0: i32) -> (i32, i32) {
    %c0_i32 = arith.constant 0 : i32
    %c0_i32_0 = arith.constant 0 : i32
    %c0_i32_1 = arith.constant 0 : i32
    return %c0_i32, %c0_i32_0 : i32, i32
  }
  func.func @transform_5(%arg0: i32) -> (i32, i32) {
    %c0_i32 = arith.constant 0 : i32
    %c0_i32_0 = arith.constant 0 : i32
    return %arg0, %c0_i32 : i32, i32
  }
}

</mosaic_0001>

<llo_original>
// kernel: mlp_policy_forward.1
$region0: #{mlp_policy_forward.1}
  #allocation0 [shape = 'u32[]', space=smem, size = 0x4, offset = 0x4, fixed_abs, tag = 'smem constant byte address 0x4 - core index']
  #allocation1 [shape = 'u32[144,128]{1,0:T(1,128)}', space=vmem, size = 0x12000, scoped, tag = 'internal scratch']
  %s0 = inlined_call_operand.hbm [shape: f32[8,16], index: 0, kind: input, shape index: {}]
  %s1 = inlined_call_operand.hbm [shape: bf16[16,32], index: 1, kind: input, shape index: {}]
  %s2 = inlined_call_operand.vmem [shape: bf16[32,32], index: 2, kind: input, shape index: {}]
  %s3 = inlined_call_operand.vmem [shape: bf16[32,4], index: 3, kind: input, shape index: {}]
  %s4 = inlined_call_operand.vmem [shape: f32[3,32], index: 4, kind: input, shape index: {}]
  %s5 = inlined_call_operand.vmem [shape: f32[8,4], index: 5, kind: output, shape index: {}]
  %s6 = sld [smem:[#allocation0]]
  $region38: #{mlp_policy_forward.1} parent=0
    _
  %s8 = ssub.s32 1, %s6
  %s9 = scalar_select 0, %s8, %s6
  $region1: #{mlp_policy_forward.1} parent=0
    #allocation2 [shape = 'u8[4096]{0}', space=vmem, size = 0x1000, scoped, tag = 'input window, operand 0, single buffered']
    #allocation3 [shape = 's32[1]{0}', space=sflag, size = 0x4, scoped, tag = 'scoped memory for mlp_policy_forward.1']
    #allocation4 [shape = 'u8[4096]{0}', space=vmem, size = 0x1000, scoped, tag = 'input window, operand 1, single buffered']
    #allocation5 [shape = 's32[1]{0}', space=sflag, size = 0x4, scoped, tag = 'scoped memory for mlp_policy_forward.1']
    %10 = vsyncpa [#allocation3], 0
    %11 = vsyncpa [#allocation5], 0
    // Predicated region
    $region2: #{mlp_policy_forward.1} parent=1 // pred_check
      _
    $region3: #{mlp_policy_forward.1} parent=1 // pred_check_branch
      %13 = sbr.rel (0) target = $region5
    $region4: #{mlp_policy_forward.1} parent=1 // pred_region
      %s15 = ssub.s32 128, 128
      %16 = vsyncadd [#allocation3], %s15
      %s18 = sshll.u32 [#allocation2], 4
      %s19 = int_to_ptr.vmem [resolvable:$true] %s18
      %21 = dma.hbm_to_vmem [thread:$0]  %s0, 128, %s19, [#allocation3]
    $region5: #{mlp_policy_forward.1} parent=1 // pred_fallthru
      _
    // Predicated region
    $region6: #{mlp_policy_forward.1} parent=1 // pred_check
      _
    $region7: #{mlp_policy_forward.1} parent=1 // pred_check_branch
      %23 = sbr.rel (0) target = $region9
    $region8: #{mlp_policy_forward.1} parent=1 // pred_region
      %s25 = ssub.s32 128, 128
      %26 = vsyncadd [#allocation5], %s25
      %s27 = sshll.u32 [#allocation4], 4
      %s28 = int_to_ptr.vmem [resolvable:$true] %s27
      %33 = dma.hbm_to_vmem [thread:$0]  %s1, 128, %s28, [#allocation5], 64, 64, 4
    $region9: #{mlp_policy_forward.1} parent=1 // pred_fallthru
      _
    // Predicated region
    $region10: #{mlp_policy_forward.1} parent=1 // pred_check
      _
    $region11: #{mlp_policy_forward.1} parent=1 // pred_check_branch
      %35 = sbr.rel (0) target = $region13
    $region12: #{mlp_policy_forward.1} parent=1 // pred_region
      _
    $region13: #{mlp_policy_forward.1} parent=1 // pred_fallthru
      _
    // Predicated region
    $region14: #{mlp_policy_forward.1} parent=1 // pred_check
      _
    $region15: #{mlp_policy_forward.1} parent=1 // pred_check_branch
      %37 = sbr.rel (0) target = $region17
    $region16: #{mlp_policy_forward.1} parent=1 // pred_region
      _
    $region17: #{mlp_policy_forward.1} parent=1 // pred_fallthru
      _
    // Predicated region
    $region18: #{mlp_policy_forward.1} parent=1 // pred_check
      _
    $region19: #{mlp_policy_forward.1} parent=1 // pred_check_branch
      %39 = sbr.rel (0) target = $region21
    $region20: #{mlp_policy_forward.1} parent=1 // pred_region
      _
    $region21: #{mlp_policy_forward.1} parent=1 // pred_fallthru
      _
    // Predicated region
    $region22: #{mlp_policy_forward.1} parent=1 // pred_check
      _
    $region23: #{mlp_policy_forward.1} parent=1 // pred_check_branch
      %41 = sbr.rel (0) target = $region25
    $region24: #{mlp_policy_forward.1} parent=1 // pred_region
      %42 = dma.done [#allocation3], 128
    $region25: #{mlp_policy_forward.1} parent=1 // pred_fallthru
      _
    // Predicated region
    $region26: #{mlp_policy_forward.1} parent=1 // pred_check
      _
    $region27: #{mlp_policy_forward.1} parent=1 // pred_check_branch
      %44 = sbr.rel (0) target = $region29
    $region28: #{mlp_policy_forward.1} parent=1 // pred_region
      %45 = dma.done [#allocation5], 128
    $region29: #{mlp_policy_forward.1} parent=1 // pred_fallthru
      _
    %v47 = vld [vmem:[%s4] sm:$0x7]
    %v48 = vld [vmem:[#allocation2] sm:$0xff]
    %v49 = vpack.c.bf16 %v48, %v48
    %v50 = vld [vmem:[#allocation4] sm:$0xf]
    %v51 = vld [vmem:[#allocation4 + $0x4] sm:$0xf]
    %v52 = vlaneseq
    %v53 = vshrl.u32 %v52, 7
    %v54 = vsub.s32 0, %v53
    %v55 = vrot.slane %v47, %v54
    %v58 = vunpack.c.l.b16 %v50
    %v59 = vunpack.c.l.b16 %v51
    %v60 = vpack.c.b16 %v59, %v58
    %vm62 = vcmask 130048
    %v64 = vsel %vm62, %v49, 0
    %66 = vmatprep.subr.bf16.mxu0 0
    %67 = vmatpush1.bf16.msra.mxu0 0
    %68 = vmatprep.subr.bf16.mxu0 0
    %69 = vmatpush1.bf16.msra.mxu0 0
    %70 = vmatprep.subr.bf16.mxu0 0
    %71 = vmatpush1.bf16.msra.mxu0 0
    %72 = vmatprep.subr.bf16.mxu0 0
    %73 = vmatpush1.bf16.msra.mxu0 0
    %74 = vmatprep.subr.bf16.mxu0 0
    %75 = vmatpush1.bf16.msra.mxu0 0
    %76 = vmatprep.subr.bf16.mxu0 0
    %77 = vmatpush1.bf16.msra.mxu0 0
    %78 = vmatprep.subr.bf16.mxu0 0
    %79 = vmatpush1.bf16.msra.mxu0 0
    %80 = vmatprep.subr.bf16.mxu0 0
    %81 = vmatpush1.bf16.msra.mxu0 %v60
    %82 = vmatprep.subr.bf16.mxu0 0
    %83 = vmatpush2.bf16.msra.mxu0 0
    %84 = vmatprep.subr.bf16.mxu0 0
    %85 = vmatpush2.bf16.msra.mxu0 0
    %86 = vmatprep.subr.bf16.mxu0 0
    %87 = vmatpush2.bf16.msra.mxu0 0
    %88 = vmatprep.subr.bf16.mxu0 0
    %89 = vmatpush2.bf16.msra.mxu0 0
    %90 = vmatprep.subr.bf16.mxu0 0
    %91 = vmatpush2.bf16.msra.mxu0 0
    %92 = vmatprep.subr.bf16.mxu0 0
    %93 = vmatpush2.bf16.msra.mxu0 0
    %94 = vmatprep.subr.bf16.mxu0 0
    %95 = vmatpush2.bf16.msra.mxu0 0
    %96 = vmatprep.subr.bf16.mxu0 0
    %97 = vmatpush2.bf16.msra.mxu0 0
    %98 = vmatprep.mubr.bf16.mxu0 0
    %99 = vmatmul.mubr.bf16.gmra.mxu0 %v64
    %v100 = vpop.f32.mrf.mxu0
    %v101 = vadd.f32 %v55, %v100
    %v102 = vpop.f32.mrf.mxu0
    %v103 = vpop.f32.mrf.mxu0
    %v104 = vpop.f32.mrf.mxu0
    %105 = vdwg.mxu0
    %v106 = vtanh.pop %v101
    %v107 = vpack.c.bf16 %v106, %v106
    %v108 = vld [vmem:[%s2] sm:$0xf]
    %v109 = vld [vmem:[%s2 + $0x4] sm:$0xf]
    %v110 = vld [vmem:[%s2 + $0x8] sm:$0xf]
    %v111 = vld [vmem:[%s2 + $0xc] sm:$0xf]
    %v112 = vlaneseq
    %v113 = vshrl.u32 %v112, 7
    %v114 = vsub.s32 1, %v113
    %v115 = vrot.slane %v47, %v114
    %v120 = vunpack.c.l.b16 %v108
    %v121 = vunpack.c.l.b16 %v109
    %v122 = vunpack.c.l.b16 %v110
    %v123 = vunpack.c.l.b16 %v111
    %v124 = vpack.c.b16 %v121, %v120
    %v125 = vpack.c.b16 %v123, %v122
    %vm128 = vcmask 261120
    %v130 = vsel %vm128, %v107, 0
    %132 = vmatprep.subr.bf16.mxu0 0
    %133 = vmatpush1.bf16.msra.mxu0 0
    %134 = vmatprep.subr.bf16.mxu0 0
    %135 = vmatpush1.bf16.msra.mxu0 0
    %136 = vmatprep.subr.bf16.mxu0 0
    %137 = vmatpush1.bf16.msra.mxu0 0
    %138 = vmatprep.subr.bf16.mxu0 0
    %139 = vmatpush1.bf16.msra.mxu0 0
    %140 = vmatprep.subr.bf16.mxu0 0
    %141 = vmatpush1.bf16.msra.mxu0 0
    %142 = vmatprep.subr.bf16.mxu0 0
    %143 = vmatpush1.bf16.msra.mxu0 0
    %144 = vmatprep.subr.bf16.mxu0 0
    %145 = vmatpush1.bf16.msra.mxu0 %v125
    %146 = vmatprep.subr.bf16.mxu0 0
    %147 = vmatpush1.bf16.msra.mxu0 %v124
    %148 = vmatprep.subr.bf16.mxu0 0
    %149 = vmatpush2.bf16.msra.mxu0 0
    %150 = vmatprep.subr.bf16.mxu0 0
    %151 = vmatpush2.bf16.msra.mxu0 0
    %152 = vmatprep.subr.bf16.mxu0 0
    %153 = vmatpush2.bf16.msra.mxu0 0
    %154 = vmatprep.subr.bf16.mxu0 0
    %155 = vmatpush2.bf16.msra.mxu0 0
    %156 = vmatprep.subr.bf16.mxu0 0
    %157 = vmatpush2.bf16.msra.mxu0 0
    %158 = vmatprep.subr.bf16.mxu0 0
    %159 = vmatpush2.bf16.msra.mxu0 0
    %160 = vmatprep.subr.bf16.mxu0 0
    %161 = vmatpush2.bf16.msra.mxu0 0
    %162 = vmatprep.subr.bf16.mxu0 0
    %163 = vmatpush2.bf16.msra.mxu0 0
    %164 = vmatprep.mubr.bf16.mxu0 0
    %165 = vmatmul.mubr.bf16.gmra.mxu0 %v130
    %v166 = vpop.f32.mrf.mxu0
    %v167 = vadd.f32 %v115, %v166
    %v168 = vpop.f32.mrf.mxu0
    %v169 = vpop.f32.mrf.mxu0
    %v170 = vpop.f32.mrf.mxu0
    %171 = vdwg.mxu0
    %v172 = vtanh.pop %v167
    %v173 = vpack.c.bf16 %v172, %v172
    %v174 = vld [vmem:[%s3] sm:$0xf]
    %v175 = vld [vmem:[%s3 + $0x4] sm:$0xf]
    %v176 = vld [vmem:[%s3 + $0x8] sm:$0xf]
    %v177 = vld [vmem:[%s3 + $0xc] sm:$0xf]
    %v178 = vlaneseq
    %v179 = vshrl.u32 %v178, 7
    %v180 = vsub.s32 2, %v179
    %v181 = vrot.slane %v47, %v180
    %v186 = vunpack.c.l.b16 %v174
    %v187 = vunpack.c.l.b16 %v175
    %v188 = vunpack.c.l.b16 %v176
    %v189 = vunpack.c.l.b16 %v177
    %v190 = vpack.c.b16 %v187, %v186
    %v191 = vpack.c.b16 %v189, %v188
    %v195 = vsel %vm128, %v173, 0
    %197 = vmatprep.subr.bf16.mxu0 0
    %198 = vmatpush1.bf16.msra.mxu0 0
    %199 = vmatprep.subr.bf16.mxu0 0
    %200 = vmatpush1.bf16.msra.mxu0 0
    %201 = vmatprep.subr.bf16.mxu0 0
    %202 = vmatpush1.bf16.msra.mxu0 0
    %203 = vmatprep.subr.bf16.mxu0 0
    %204 = vmatpush1.bf16.msra.mxu0 0
    %205 = vmatprep.subr.bf16.mxu0 0
    %206 = vmatpush1.bf16.msra.mxu0 0
    %207 = vmatprep.subr.bf16.mxu0 0
    %208 = vmatpush1.bf16.msra.mxu0 0
    %209 = vmatprep.subr.bf16.mxu0 0
    %210 = vmatpush1.bf16.msra.mxu0 %v191
    %211 = vmatprep.subr.bf16.mxu0 0
    %212 = vmatpush1.bf16.msra.mxu0 %v190
    %213 = vmatprep.subr.bf16.mxu0 0
    %214 = vmatpush2.bf16.msra.mxu0 0
    %215 = vmatprep.subr.bf16.mxu0 0
    %216 = vmatpush2.bf16.msra.mxu0 0
    %217 = vmatprep.subr.bf16.mxu0 0
    %218 = vmatpush2.bf16.msra.mxu0 0
    %219 = vmatprep.subr.bf16.mxu0 0
    %220 = vmatpush2.bf16.msra.mxu0 0
    %221 = vmatprep.subr.bf16.mxu0 0
    %222 = vmatpush2.bf16.msra.mxu0 0
    %223 = vmatprep.subr.bf16.mxu0 0
    %224 = vmatpush2.bf16.msra.mxu0 0
    %225 = vmatprep.subr.bf16.mxu0 0
    %226 = vmatpush2.bf16.msra.mxu0 0
    %227 = vmatprep.subr.bf16.mxu0 0
    %228 = vmatpush2.bf16.msra.mxu0 0
    %229 = vmatprep.mubr.bf16.mxu0 0
    %230 = vmatmul.mubr.bf16.gmra.mxu0 %v195
    %v231 = vpop.f32.mrf.mxu0
    %v232 = vadd.f32 %v181, %v231
    %v233 = vpop.f32.mrf.mxu0
    %v234 = vpop.f32.mrf.mxu0
    %v235 = vpop.f32.mrf.mxu0
    %236 = vdwg.mxu0
    %vm237 = vcmask 31744
    %238 = vst.msk [vmem:[%s5] sm:$0xff] %vm237, %v232
    // Predicated region
    $region30: #{mlp_policy_forward.1} parent=1 // pred_check
      _
    $region31: #{mlp_policy_forward.1} parent=1 // pred_check_branch
      %240 = sbr.rel (0) target = $region33
    $region32: #{mlp_policy_forward.1} parent=1 // pred_region
      _
    $region33: #{mlp_policy_forward.1} parent=1 // pred_fallthru
      _
    // Predicated region
    $region34: #{mlp_policy_forward.1} parent=1 // pred_check
      _
    $region35: #{mlp_policy_forward.1} parent=1 // pred_check_branch
      %242 = sbr.rel (0) target = $region37
    $region36: #{mlp_policy_forward.1} parent=1 // pred_region
      _
    $region37: #{mlp_policy_forward.1} parent=1 // pred_fallthru
      _
    %243 = vsyncpa [#allocation3], 1
    %244 = vsyncpa [#allocation5], 1

</llo_original>
